<compile_context>
chip_gen: v7x
topology: tpu7x:2x2x1
jax: 0.10.0
libtpu: 0.0.40
codegen_flags: <defaults>
</compile_context>

<pallas_src>
import math

import numpy as np

import jax
import jax.numpy as jnp
from jax.experimental import pallas as pl
from jax.experimental.pallas import tpu as pltpu


def _stgnn_kernel(x_ref, adj_ref, wc1_ref, bc1_ref, th1_ref, th2_ref,
                  wc2_ref, bc2_ref, wfc_ref, bfc_ref, out_ref):
    """One grid step: Bb samples x Np nodes handled as one (rows, lane) slab."""
    cd = x_ref.dtype                      # matmul operand dtype (f32 or bf16)
    adj_bd = adj_ref[...]                 # block-diag kron(I_Bb, adj)

    # --- conv1: all K temporal taps folded into one Toeplitz matmul ----------
    h = jnp.dot(x_ref[...], wc1_ref[...], preferred_element_type=jnp.float32)
    h = jnp.maximum(h + bc1_ref[...], 0.0)                  # (rows, T1*C1) f32

    # --- graph conv 1: relu(adj @ (h @ theta1)) ------------------------------
    # theta1 is block-diagonal over time, adjacency is block-diagonal over the
    # Bb samples -> two full-width MXU pushes, no per-sample loop or concat.
    z = jnp.dot(h.astype(cd), th1_ref[...], preferred_element_type=jnp.float32)
    h = jnp.maximum(
        jnp.dot(adj_bd, z.astype(cd), preferred_element_type=jnp.float32), 0.0)

    # --- graph conv 2: relu(adj @ (h @ theta2)) ------------------------------
    z = jnp.dot(h.astype(cd), th2_ref[...], preferred_element_type=jnp.float32)
    h = jnp.maximum(
        jnp.dot(adj_bd, z.astype(cd), preferred_element_type=jnp.float32), 0.0)

    # --- conv2: banded Toeplitz matmul + bias + relu -------------------------
    g = jnp.dot(h.astype(cd), wc2_ref[...], preferred_element_type=jnp.float32)
    g = jnp.maximum(g + bc2_ref[...], 0.0)                  # (rows, T2*C_out)

    # --- fc over the flattened (T2, C_out) axis; single contiguous store -----
    out = jnp.dot(g.astype(cd), wfc_ref[...], preferred_element_type=jnp.float32)
    out_ref[...] = (out + bfc_ref[...]).astype(out_ref.dtype)


def pack_params(params, time_steps, compute_dtype=jnp.float32):
    """One-time host-side (numpy) repack of module parameters into matmul form.

    Hoisted out of the forward path so the forward never re-emits the
    scatter / kron ops that build the banded / block-diagonal weights."""
    w1, b1, th1, th2, w2, b2, wfc, bfc = [np.asarray(p, np.float32) for p in params]
    K, F_in, C1 = w1.shape
    H = th1.shape[1]
    C2 = th2.shape[1]
    C_out = w2.shape[2]
    T = time_steps
    T1 = T - (K - 1)
    T2 = T1 - (K - 1)
    P = wfc.shape[2]

    # conv1 as a banded (T*F_in, T1*C1) Toeplitz matrix: one MXU push, all taps.
    wc1 = np.zeros((T * F_in, T1 * C1), np.float32)
    for t in range(T1):
        for k in range(K):
            wc1[(t + k) * F_in:(t + k + 1) * F_in, t * C1:(t + 1) * C1] = w1[k]
    bc1 = np.tile(b1, (1, T1))                              # (1, T1*C1)

    # theta1/theta2 block-diagonal over time.
    th1_bd = np.kron(np.eye(T1, dtype=np.float32), th1)     # (T1*C1, T1*H)
    th2_bd = np.kron(np.eye(T1, dtype=np.float32), th2)     # (T1*H,  T1*C2)

    # conv2 as a banded (T1*C2, T2*C_out) matrix.
    wc2 = np.zeros((T1 * C2, T2 * C_out), np.float32)
    for t in range(T2):
        for k in range(K):
            wc2[(t + k) * C2:(t + k + 1) * C2, t * C_out:(t + 1) * C_out] = w2[k]
    bc2 = np.tile(b2, (1, T2))                              # (1, T2*C_out)

    wfc_flat = wfc.reshape(T2 * C_out, P)                   # (T2*C_out, P)

    cd = compute_dtype                                       # matmul operands
    return {
        'wc1': jnp.asarray(wc1, cd),    'bc1': jnp.asarray(bc1, jnp.float32),
        'th1_bd': jnp.asarray(th1_bd, cd),
        'th2_bd': jnp.asarray(th2_bd, cd),
        'wc2': jnp.asarray(wc2, cd),    'bc2': jnp.asarray(bc2, jnp.float32),
        'wfc': jnp.asarray(wfc_flat, cd), 'bfc': jnp.asarray(bfc, jnp.float32),
    }


def stgnn_forward(x, adj, packed, *, max_rows_per_step=256):
    """x: (B, n_nodes, time_steps, in_channels); adj: (n_nodes, n_nodes).

    `packed` comes from pack_params().  Returns (B, n_nodes, pred_time_steps).
    max_rows_per_step caps Bb*Np (MXU rows per grid step); 256 fits the
    256x256 MXUs of v6e/v7x and is still fine on v5e's 128x128 MXUs."""
    B, N, T, F_in = x.shape
    cd = packed['wc1'].dtype
    TF = T * F_in
    assert packed['wc1'].shape[0] == TF, (packed['wc1'].shape, TF)
    P = packed['wfc'].shape[1]

    # Pad node count to a multiple of 8 so every sublane boundary is aligned.
    Np = -(-N // 8) * 8
    if Np != N:
        x = jnp.pad(x, ((0, 0), (0, Np - N), (0, 0), (0, 0)))
        adj = jnp.pad(adj, ((0, Np - N), (0, Np - N)))

    # Flat, contiguous input slab (reshape only, no transpose).
    x2 = x.reshape(B * Np, TF).astype(cd)

    # Pick samples-per-step Bb: target max_rows_per_step MXU rows, prefer a
    # grid of length >= 2 so v7x can shard the parallel axis over both TCs.
    bb_cap = max(1, max_rows_per_step // Np)
    divisors = [d for d in range(1, B + 1) if B % d == 0 and d <= bb_cap]
    pref = [d for d in divisors if B // d >= 2]
    Bb = max(pref) if pref else max(divisors)
    rows = Bb * Np
    grid = (B // Bb,)

    # Block-diagonal adjacency: per-sample propagation as ONE MXU push.
    adj_bd = jnp.kron(jnp.eye(Bb, dtype=jnp.float32),
                      adj.astype(jnp.float32)).astype(cd)

    weight_keys = ('wc1', 'bc1', 'th1_bd', 'th2_bd', 'wc2', 'bc2', 'wfc', 'bfc')

    # Rough VMEM budget (double-buffered blocks + activation headroom); only
    # raise the scoped limit when the default 32 MiB would not be enough.
    weight_bytes = sum(int(packed[k].size) * packed[k].dtype.itemsize
                       for k in weight_keys)
    blk_bytes = (rows * TF * x2.dtype.itemsize
                 + int(adj_bd.size) * adj_bd.dtype.itemsize
                 + weight_bytes
                 + rows * P * 4)
    est = 2 * blk_bytes + (8 << 20)
    vmem_limit = None if est <= (32 << 20) else int(min(est, 64 << 20))

    in_specs = [
        pl.BlockSpec((rows, TF), lambda b: (b, 0)),
        pl.BlockSpec(adj_bd.shape, lambda b: (0, 0)),
    ] + [pl.BlockSpec(packed[k].shape, lambda b: (0, 0)) for k in weight_keys]

    grid_spec = pltpu.PrefetchScalarGridSpec(
        num_scalar_prefetch=0,
        grid=grid,
        in_specs=in_specs,
        out_specs=pl.BlockSpec((rows, P), lambda b: (b, 0)),
    )
    out_flat = pl.pallas_call(
        _stgnn_kernel,
        out_shape=jax.ShapeDtypeStruct((B * Np, P), jnp.float32),
        grid_spec=grid_spec,
        compiler_params=pltpu.CompilerParams(
            dimension_semantics=("parallel",),
            vmem_limit_bytes=vmem_limit),
    )(x2, adj_bd, *[packed[k] for k in weight_keys])

    out = out_flat.reshape(B, Np, P)
    if Np != N:
        out = out[:, :N, :]
    return out


def init_params(key, *, in_channels, spatial_channels, spatial_hidden_channels,
                spatial_out_channels, out_channels, temporal_kernel,
                time_steps, predicted_time_steps):
    """Deterministic init mirroring the PyTorch module's parameter shapes."""
    K = temporal_kernel
    T2 = time_steps - 2 * (K - 1)
    ks = jax.random.split(key, 8)

    def u(k, shape, bound):
        return jax.random.uniform(k, shape, jnp.float32, -bound, bound)

    b_c1 = 1.0 / math.sqrt(in_channels * K)
    w1 = u(ks[0], (K, in_channels, spatial_channels), b_c1)        # conv1.weight
    b1 = u(ks[1], (1, spatial_channels), b_c1)                      # conv1.bias
    th1 = u(ks[2], (spatial_channels, spatial_hidden_channels),
            1.0 / math.sqrt(spatial_hidden_channels))               # theta1
    th2 = u(ks[3], (spatial_hidden_channels, spatial_out_channels),
            1.0 / math.sqrt(spatial_out_channels))                  # theta2
    b_c2 = 1.0 / math.sqrt(spatial_out_channels * K)
    w2 = u(ks[4], (K, spatial_out_channels, out_channels), b_c2)    # conv2.weight
    b2 = u(ks[5], (1, out_channels), b_c2)                          # conv2.bias
    b_fc = 1.0 / math.sqrt(T2 * out_channels)
    wfc = u(ks[6], (T2, out_channels, predicted_time_steps), b_fc)  # fc.weight^T
    bfc = u(ks[7], (1, predicted_time_steps), b_fc)                 # fc.bias
    return (w1, b1, th1, th2, w2, b2, wfc, bfc)


def reference_forward(x, adj, params):
    """Pure-JAX reference of the PyTorch forward (for a correctness check)."""
    w1, b1, th1, th2, w2, b2, wfc, bfc = params
    B, N, T, F_in = x.shape
    K = w1.shape[0]
    T1 = T - (K - 1)
    T2 = T1 - (K - 1)

    h0 = jnp.stack([
        sum(jnp.einsum('bnf,fc->bnc', x[:, :, t + k, :], w1[k])
            for k in range(K)) + b1
        for t in range(T1)], axis=2)                   # (B, N, T1, C1)
    h0 = jax.nn.relu(h0)
    h1 = jnp.einsum('ij,bjtc->bitc', adj,
                    jnp.einsum('bntc,cd->bntd', h0, th1))
    h1 = jax.nn.relu(h1)
    h2 = jnp.einsum('ij,bjtc->bitc', adj,
                    jnp.einsum('bntc,cd->bntd', h1, th2))
    h2 = jax.nn.relu(h2)
    g = jnp.stack([
        sum(jnp.einsum('bnc,cd->bnd', h2[:, :, t + k, :], w2[k])
            for k in range(K)) + b2
        for t in range(T2)], axis=2)                   # (B, N, T2, C_out)
    g = jax.nn.relu(g)
    return jnp.einsum('bntc,tcp->bnp', g, wfc) + bfc


if __name__ == "__main__":
    # Small shapes consistent with the module: batch=2, n_nodes=16,
    # time_steps=8, in_channels=1, all hidden channel sizes 16, kernel 3.
    B, N_NODES, T, F_IN = 2, 16, 8, 1
    SPATIAL = SPATIAL_HID = SPATIAL_OUT = OUT_CH = 16
    K = 3
    P = 1

    key = jax.random.PRNGKey(0)
    k_x, k_adj, k_par = jax.random.split(key, 3)

    x = jax.random.normal(k_x, (B, N_NODES, T, F_IN), jnp.float32)

    # Normalized adjacency: symmetric random graph + self loops, D^-1/2 A D^-1/2
    a = (jax.random.uniform(k_adj, (N_NODES, N_NODES)) > 0.6).astype(jnp.float32)
    a = jnp.maximum(a, a.T) + jnp.eye(N_NODES, dtype=jnp.float32)
    d_inv_sqrt = 1.0 / jnp.sqrt(jnp.sum(a, axis=1))
    adj = a * d_inv_sqrt[:, None] * d_inv_sqrt[None, :]

    params = init_params(
        k_par, in_channels=F_IN, spatial_channels=SPATIAL,
        spatial_hidden_channels=SPATIAL_HID, spatial_out_channels=SPATIAL_OUT,
        out_channels=OUT_CH, temporal_kernel=K, time_steps=T,
        predicted_time_steps=P)

    ref = reference_forward(x, adj, params)

    # f32 matmul path (matches the PyTorch/JAX reference numerics).
    packed_f32 = pack_params(params, time_steps=T, compute_dtype=jnp.float32)
    out = jax.block_until_ready(stgnn_forward(x, adj, packed_f32))
    assert out.shape == (B, N_NODES, P), out.shape
    assert jnp.allclose(out, ref, atol=1e-4, rtol=1e-4), \
        float(jnp.max(jnp.abs(out - ref)))

    # bf16 matmul-operand path (MXU-native; f32 accumulation / bias / relu).
    packed_bf16 = pack_params(params, time_steps=T, compute_dtype=jnp.bfloat16)
    out_bf16 = jax.block_until_ready(stgnn_forward(x, adj, packed_bf16))
    assert out_bf16.shape == (B, N_NODES, P), out_bf16.shape
    assert jnp.allclose(out_bf16, ref, atol=1e-1, rtol=1e-1), \
        float(jnp.max(jnp.abs(out_bf16 - ref)))

    print("KERNEL_OK")
</pallas_src>

<mosaic_0001>
module attributes {stable_mosaic.version = 11 : i64} {
  func.func @_stgnn_kernel(%arg0: i32, %arg1: memref<16x8xf32, #tpu.memory_space<vmem>>, %arg2: memref<16x16xf32, #tpu.memory_space<vmem>>, %arg3: memref<8x96xf32, #tpu.memory_space<vmem>>, %arg4: memref<1x96xf32, #tpu.memory_space<vmem>>, %arg5: memref<96x96xf32, #tpu.memory_space<vmem>>, %arg6: memref<96x96xf32, #tpu.memory_space<vmem>>, %arg7: memref<96x64xf32, #tpu.memory_space<vmem>>, %arg8: memref<1x64xf32, #tpu.memory_space<vmem>>, %arg9: memref<64x1xf32, #tpu.memory_space<vmem>>, %arg10: memref<1x1xf32, #tpu.memory_space<vmem>>, %arg11: memref<16x1xf32, #tpu.memory_space<vmem>>) attributes {dimension_semantics = [#tpu.dimension_semantics<parallel>], iteration_bounds = array<i64: 2>, scalar_prefetch = 0 : i64, scratch_operands = 0 : i64, tpu.core_type = #tpu.core_type<tc>, window_params = [{transform_indices = @transform_0, window_bounds = array<i64: 16, 8>}, {pipeline_mode = #tpu.pipeline_mode<synchronous>, transform_indices = @transform_1, window_bounds = array<i64: 16, 16>}, {pipeline_mode = #tpu.pipeline_mode<synchronous>, transform_indices = @transform_2, window_bounds = array<i64: 8, 96>}, {pipeline_mode = #tpu.pipeline_mode<synchronous>, transform_indices = @transform_3, window_bounds = array<i64: 1, 96>}, {pipeline_mode = #tpu.pipeline_mode<synchronous>, transform_indices = @transform_4, window_bounds = array<i64: 96, 96>}, {pipeline_mode = #tpu.pipeline_mode<synchronous>, transform_indices = @transform_5, window_bounds = array<i64: 96, 96>}, {pipeline_mode = #tpu.pipeline_mode<synchronous>, transform_indices = @transform_6, window_bounds = array<i64: 96, 64>}, {pipeline_mode = #tpu.pipeline_mode<synchronous>, transform_indices = @transform_7, window_bounds = array<i64: 1, 64>}, {pipeline_mode = #tpu.pipeline_mode<synchronous>, transform_indices = @transform_8, window_bounds = array<i64: 64, 1>}, {pipeline_mode = #tpu.pipeline_mode<synchronous>, transform_indices = @transform_9, window_bounds = array<i64: 1, 1>}, {transform_indices = @transform_10, window_bounds = array<i64: 16, 1>}]} {
    %c0 = arith.constant 0 : index
    %c0_0 = arith.constant 0 : index
    %0 = vector.load %arg2[%c0, %c0_0] : memref<16x16xf32, #tpu.memory_space<vmem>>, vector<16x16xf32>
    %c0_1 = arith.constant 0 : index
    %c0_2 = arith.constant 0 : index
    %1 = vector.load %arg1[%c0_1, %c0_2] : memref<16x8xf32, #tpu.memory_space<vmem>>, vector<16x8xf32>
    %c0_3 = arith.constant 0 : index
    %c0_4 = arith.constant 0 : index
    %2 = vector.load %arg3[%c0_3, %c0_4] : memref<8x96xf32, #tpu.memory_space<vmem>>, vector<8x96xf32>
    %cst = arith.constant dense<0.000000e+00> : vector<16x96xf32>
    %3 = tpu.matmul %1, %2, %cst {dimension_numbers = #tpu.dot_dimension_numbers<[1], [0], [0], [1], [0, 0, 1, 1], [], []>} : vector<16x8xf32>, vector<8x96xf32>, vector<16x96xf32> -> vector<16x96xf32>
    %c0_5 = arith.constant 0 : index
    %c0_6 = arith.constant 0 : index
    %4 = vector.load %arg4[%c0_5, %c0_6] : memref<1x96xf32, #tpu.memory_space<vmem>>, vector<1x96xf32>
    %5 = vector.broadcast %4 : vector<1x96xf32> to vector<16x96xf32>
    %6 = arith.addf %3, %5 : vector<16x96xf32>
    %cst_7 = arith.constant 0.000000e+00 : f32
    %7 = vector.broadcast %cst_7 : f32 to vector<16x96xf32>
    %8 = arith.maximumf %6, %7 : vector<16x96xf32>
    %c0_8 = arith.constant 0 : index
    %c0_9 = arith.constant 0 : index
    %9 = vector.load %arg5[%c0_8, %c0_9] : memref<96x96xf32, #tpu.memory_space<vmem>>, vector<96x96xf32>
    %cst_10 = arith.constant dense<0.000000e+00> : vector<16x96xf32>
    %10 = tpu.matmul %8, %9, %cst_10 {dimension_numbers = #tpu.dot_dimension_numbers<[1], [0], [0], [1], [0, 0, 1, 1], [], []>} : vector<16x96xf32>, vector<96x96xf32>, vector<16x96xf32> -> vector<16x96xf32>
    %cst_11 = arith.constant dense<0.000000e+00> : vector<16x96xf32>
    %11 = tpu.matmul %0, %10, %cst_11 {dimension_numbers = #tpu.dot_dimension_numbers<[1], [0], [0], [1], [0, 0, 1, 1], [], []>} : vector<16x16xf32>, vector<16x96xf32>, vector<16x96xf32> -> vector<16x96xf32>
    %cst_12 = arith.constant 0.000000e+00 : f32
    %12 = vector.broadcast %cst_12 : f32 to vector<16x96xf32>
    %13 = arith.maximumf %11, %12 : vector<16x96xf32>
    %c0_13 = arith.constant 0 : index
    %c0_14 = arith.constant 0 : index
    %14 = vector.load %arg6[%c0_13, %c0_14] : memref<96x96xf32, #tpu.memory_space<vmem>>, vector<96x96xf32>
    %cst_15 = arith.constant dense<0.000000e+00> : vector<16x96xf32>
    %15 = tpu.matmul %13, %14, %cst_15 {dimension_numbers = #tpu.dot_dimension_numbers<[1], [0], [0], [1], [0, 0, 1, 1], [], []>} : vector<16x96xf32>, vector<96x96xf32>, vector<16x96xf32> -> vector<16x96xf32>
    %cst_16 = arith.constant dense<0.000000e+00> : vector<16x96xf32>
    %16 = tpu.matmul %0, %15, %cst_16 {dimension_numbers = #tpu.dot_dimension_numbers<[1], [0], [0], [1], [0, 0, 1, 1], [], []>} : vector<16x16xf32>, vector<16x96xf32>, vector<16x96xf32> -> vector<16x96xf32>
    %cst_17 = arith.constant 0.000000e+00 : f32
    %17 = vector.broadcast %cst_17 : f32 to vector<16x96xf32>
    %18 = arith.maximumf %16, %17 : vector<16x96xf32>
    %c0_18 = arith.constant 0 : index
    %c0_19 = arith.constant 0 : index
    %19 = vector.load %arg7[%c0_18, %c0_19] : memref<96x64xf32, #tpu.memory_space<vmem>>, vector<96x64xf32>
    %cst_20 = arith.constant dense<0.000000e+00> : vector<16x64xf32>
    %20 = tpu.matmul %18, %19, %cst_20 {dimension_numbers = #tpu.dot_dimension_numbers<[1], [0], [0], [1], [0, 0, 1, 1], [], []>} : vector<16x96xf32>, vector<96x64xf32>, vector<16x64xf32> -> vector<16x64xf32>
    %c0_21 = arith.constant 0 : index
    %c0_22 = arith.constant 0 : index
    %21 = vector.load %arg8[%c0_21, %c0_22] : memref<1x64xf32, #tpu.memory_space<vmem>>, vector<1x64xf32>
    %22 = vector.broadcast %21 : vector<1x64xf32> to vector<16x64xf32>
    %23 = arith.addf %20, %22 : vector<16x64xf32>
    %cst_23 = arith.constant 0.000000e+00 : f32
    %24 = vector.broadcast %cst_23 : f32 to vector<16x64xf32>
    %25 = arith.maximumf %23, %24 : vector<16x64xf32>
    %c0_24 = arith.constant 0 : index
    %c0_25 = arith.constant 0 : index
    %26 = vector.load %arg9[%c0_24, %c0_25] : memref<64x1xf32, #tpu.memory_space<vmem>>, vector<64x1xf32>
    %cst_26 = arith.constant dense<0.000000e+00> : vector<16x1xf32>
    %27 = tpu.matmul %25, %26, %cst_26 {dimension_numbers = #tpu.dot_dimension_numbers<[1], [0], [0], [1], [0, 0, 1, 1], [], []>} : vector<16x64xf32>, vector<64x1xf32>, vector<16x1xf32> -> vector<16x1xf32>
    %c0_27 = arith.constant 0 : index
    %c0_28 = arith.constant 0 : index
    %28 = vector.load %arg10[%c0_27, %c0_28] : memref<1x1xf32, #tpu.memory_space<vmem>>, vector<1x1xf32>
    %29 = vector.broadcast %28 : vector<1x1xf32> to vector<16x1xf32>
    %30 = arith.addf %27, %29 : vector<16x1xf32>
    %c0_29 = arith.constant 0 : index
    %c0_30 = arith.constant 0 : index
    %31 = vector.load %arg11[%c0_29, %c0_30] : memref<16x1xf32, #tpu.memory_space<vmem>>, vector<16x1xf32>
    tpu.vector_store %arg11[%c0_29, %c0_30], %30 {strides = array<i32>} : memref<16x1xf32, #tpu.memory_space<vmem>>, vector<16x1xf32>,
    return
  }
  func.func @transform_0(%arg0: i32) -> (i32, i32) {
    %c0_i32 = arith.constant 0 : i32
    %c0_i32_0 = arith.constant 0 : i32
    return %arg0, %c0_i32 : i32, i32
  }
  func.func @transform_1(%arg0: i32) -> (i32, i32) {
    %c0_i32 = arith.constant 0 : i32
    %c0_i32_0 = arith.constant 0 : i32
    %c0_i32_1 = arith.constant 0 : i32
    return %c0_i32, %c0_i32_0 : i32, i32
  }
  func.func @transform_2(%arg0: i32) -> (i32, i32) {
    %c0_i32 = arith.constant 0 : i32
    %c0_i32_0 = arith.constant 0 : i32
    %c0_i32_1 = arith.constant 0 : i32
    return %c0_i32, %c0_i32_0 : i32, i32
  }
  func.func @transform_3(%arg0: i32) -> (i32, i32) {
    %c0_i32 = arith.constant 0 : i32
    %c0_i32_0 = arith.constant 0 : i32
    %c0_i32_1 = arith.constant 0 : i32
    return %c0_i32, %c0_i32_0 : i32, i32
  }
  func.func @transform_4(%arg0: i32) -> (i32, i32) {
    %c0_i32 = arith.constant 0 : i32
    %c0_i32_0 = arith.constant 0 : i32
    %c0_i32_1 = arith.constant 0 : i32
    return %c0_i32, %c0_i32_0 : i32, i32
  }
  func.func @transform_5(%arg0: i32) -> (i32, i32) {
    %c0_i32 = arith.constant 0 : i32
    %c0_i32_0 = arith.constant 0 : i32
    %c0_i32_1 = arith.constant 0 : i32
    return %c0_i32, %c0_i32_0 : i32, i32
  }
  func.func @transform_6(%arg0: i32) -> (i32, i32) {
    %c0_i32 = arith.constant 0 : i32
    %c0_i32_0 = arith.constant 0 : i32
    %c0_i32_1 = arith.constant 0 : i32
    return %c0_i32, %c0_i32_0 : i32, i32
  }
  func.func @transform_7(%arg0: i32) -> (i32, i32) {
    %c0_i32 = arith.constant 0 : i32
    %c0_i32_0 = arith.constant 0 : i32
    %c0_i32_1 = arith.constant 0 : i32
    return %c0_i32, %c0_i32_0 : i32, i32
  }
  func.func @transform_8(%arg0: i32) -> (i32, i32) {
    %c0_i32 = arith.constant 0 : i32
    %c0_i32_0 = arith.constant 0 : i32
    %c0_i32_1 = arith.constant 0 : i32
    return %c0_i32, %c0_i32_0 : i32, i32
  }
  func.func @transform_9(%arg0: i32) -> (i32, i32) {
    %c0_i32 = arith.constant 0 : i32
    %c0_i32_0 = arith.constant 0 : i32
    %c0_i32_1 = arith.constant 0 : i32
    return %c0_i32, %c0_i32_0 : i32, i32
  }
  func.func @transform_10(%arg0: i32) -> (i32, i32) {
    %c0_i32 = arith.constant 0 : i32
    %c0_i32_0 = arith.constant 0 : i32
    return %arg0, %c0_i32 : i32, i32
  }
}

</mosaic_0001>

<llo_original>
// kernel: tpu_custom_call.1
$region0: #{tpu_custom_call.1}
  #allocation0 [shape = 'u32[]', space=smem, size = 0x4, offset = 0x4, fixed_abs, tag = 'smem constant byte address 0x4 - core index']
  #allocation1 [shape = 'u32[144,128]{1,0:T(1,128)}', space=vmem, size = 0x12000, scoped, tag = 'internal scratch']
  #allocation2 [shape = 'f32[1,1]{1,0:T(1,128)S(1)}', space=vmem, size = 0x200, scoped, tag = 'scoped memory for tpu_custom_call.1']
  %s0 = inlined_call_operand.vmem [shape: f32[32,8], index: 0, kind: input, shape index: {}]
  %s1 = inlined_call_operand.vmem [shape: f32[16,16], index: 1, kind: input, shape index: {}]
  %s2 = inlined_call_operand.vmem [shape: f32[8,96], index: 2, kind: input, shape index: {}]
  %s3 = inlined_call_operand.vmem [shape: f32[1,96], index: 3, kind: input, shape index: {}]
  %s4 = inlined_call_operand.vmem [shape: f32[96,96], index: 4, kind: input, shape index: {}]
  %s5 = inlined_call_operand.vmem [shape: f32[96,96], index: 5, kind: input, shape index: {}]
  %s6 = inlined_call_operand.vmem [shape: f32[96,64], index: 6, kind: input, shape index: {}]
  %s7 = inlined_call_operand.vmem [shape: f32[1,64], index: 7, kind: input, shape index: {}]
  %s8 = inlined_call_operand.vmem [shape: f32[64,1], index: 8, kind: input, shape index: {}]
  %s9 = inlined_call_operand.<no memory space> [shape: f32[1,1], index: 9, kind: input, shape index: {}]
  %s10 = inlined_call_operand.vmem [shape: f32[32,1], index: 10, kind: output, shape index: {}]
  %s11 = sld [smem:[#allocation0]]
  $region73: #{tpu_custom_call.1} parent=0
    _
  %s13 = ssub.s32 1, %s11
  %s14 = scalar_select 0, %s13, %s11
  %v15 = vstv %s9
  %16 = vst [vmem:[#allocation2] sm:$0x1] %v15
  loop: start=0, step=1, limit=4
  $region2: #{tpu_custom_call.1} parent=0 // loop_pre_header
    _
  $region3: #{tpu_custom_call.1} parent=0 // loop_header
    %s18 = sphi 0, %s22
    %p19 = scmp.ge.s32.totalorder %s18, 4
    %s28 = sphi 0, %s30
    %s31 = sphi 0, %s28
    %s32 = sphi 0, %s31
    %s48 = sphi 0, %s32
    %s52 = sphi 0, %s52
    %s54 = sphi 0, %s52
    %s55 = sphi 0, %s54
    %s69 = sphi 0, %s55
    %s73 = sphi 0, %s73
    %s75 = sphi 0, %s73
    %s76 = sphi 0, %s75
    %s90 = sphi 0, %s76
    %s94 = sphi 0, %s94
    %s96 = sphi 0, %s94
    %s97 = sphi 0, %s96
    %s111 = sphi 0, %s97
    %s115 = sphi 0, %s115
    %s117 = sphi 0, %s115
    %s118 = sphi 0, %s117
    %s132 = sphi 0, %s118
    %s136 = sphi 0, %s136
    %s138 = sphi 0, %s136
    %s139 = sphi 0, %s138
    %s153 = sphi 0, %s139
    %s157 = sphi 0, %s157
    %s159 = sphi 0, %s157
    %s160 = sphi 0, %s159
    %s174 = sphi 0, %s160
    %s178 = sphi 0, %s178
    %s180 = sphi 0, %s178
    %s181 = sphi 0, %s180
    %s195 = sphi 0, %s181
    %s199 = sphi 0, %s199
    %s201 = sphi 0, %s199
    %s202 = sphi 0, %s201
    %s216 = sphi 0, %s202
    %s220 = sphi 0, %s220
    %s222 = sphi 0, %s220
    %s223 = sphi 0, %s222
    %s237 = sphi 0, %s223
    %s243 = sphi 0, %s245
    %s246 = sphi 0, %s243
    %s247 = sphi 0, %s246
    %s263 = sphi 0, %s247
  $region4: #{tpu_custom_call.1} parent=0 // loop_header_branch
    %21 = sbr.rel (%p19) target = $region8
  $region5: #{tpu_custom_call.1} parent=0 // loop_body
    %s23 = ssub.s32 %s18, 1
    %s24 = ssub.s32 %s18, 2
    %s25 = sadd.s32 %s18, 1
    %s26 = ssub.s32 %s18, %s25
    %p27 = scmp.eq.s32.totalorder %s26, 0
    %s29 = sadd.s32 %s28, 1
    %s30 = scalar_select %p27, %s28, %s29
    %p33 = pneg %p27
    %p34 = scmp.eq.s32.totalorder %s18, 1
    %p35 = por %p33, %p34
    %p36 = scmp.ne.s32.totalorder %s28, %s31
    %p37 = scmp.eq.s32.totalorder %s18, 0
    %p38 = por %p36, %p37
    %p39 = scmp.ne.s32.totalorder %s28, %s31
    %p40 = scmp.eq.s32.totalorder %s23, 1
    %p41 = por %p39, %p40
    %p42 = scmp.ne.s32.totalorder %s31, %s32
    %p43 = scmp.eq.s32.totalorder %s23, 0
    %p44 = por %p42, %p43
    %p45 = scmp.ne.s32.totalorder %s31, %s32
    %p46 = scmp.eq.s32.totalorder %s24, 1
    %p47 = por %p45, %p46
    %p49 = scmp.ne.s32.totalorder %s32, %s48
    %p50 = scmp.eq.s32.totalorder %s24, 0
    %p51 = por %p49, %p50
    %s53 = sadd.s32 %s52, 1
    %p56 = scmp.eq.s32.totalorder %s18, 1
    %p57 = scmp.ne.s32.totalorder %s52, %s54
    %p58 = scmp.eq.s32.totalorder %s18, 0
    %p59 = por %p57, %p58
    %p60 = scmp.ne.s32.totalorder %s52, %s54
    %p61 = scmp.eq.s32.totalorder %s23, 1
    %p62 = por %p60, %p61
    %p63 = scmp.ne.s32.totalorder %s54, %s55
    %p64 = scmp.eq.s32.totalorder %s23, 0
    %p65 = por %p63, %p64
    %p66 = scmp.ne.s32.totalorder %s54, %s55
    %p67 = scmp.eq.s32.totalorder %s24, 1
    %p68 = por %p66, %p67
    %p70 = scmp.ne.s32.totalorder %s55, %s69
    %p71 = scmp.eq.s32.totalorder %s24, 0
    %p72 = por %p70, %p71
    %s74 = sadd.s32 %s73, 1
    %p77 = scmp.eq.s32.totalorder %s18, 1
    %p78 = scmp.ne.s32.totalorder %s73, %s75
    %p79 = scmp.eq.s32.totalorder %s18, 0
    %p80 = por %p78, %p79
    %p81 = scmp.ne.s32.totalorder %s73, %s75
    %p82 = scmp.eq.s32.totalorder %s23, 1
    %p83 = por %p81, %p82
    %p84 = scmp.ne.s32.totalorder %s75, %s76
    %p85 = scmp.eq.s32.totalorder %s23, 0
    %p86 = por %p84, %p85
    %p87 = scmp.ne.s32.totalorder %s75, %s76
    %p88 = scmp.eq.s32.totalorder %s24, 1
    %p89 = por %p87, %p88
    %p91 = scmp.ne.s32.totalorder %s76, %s90
    %p92 = scmp.eq.s32.totalorder %s24, 0
    %p93 = por %p91, %p92
    %s95 = sadd.s32 %s94, 1
    %p98 = scmp.eq.s32.totalorder %s18, 1
    %p99 = scmp.ne.s32.totalorder %s94, %s96
    %p100 = scmp.eq.s32.totalorder %s18, 0
    %p101 = por %p99, %p100
    %p102 = scmp.ne.s32.totalorder %s94, %s96
    %p103 = scmp.eq.s32.totalorder %s23, 1
    %p104 = por %p102, %p103
    %p105 = scmp.ne.s32.totalorder %s96, %s97
    %p106 = scmp.eq.s32.totalorder %s23, 0
    %p107 = por %p105, %p106
    %p108 = scmp.ne.s32.totalorder %s96, %s97
    %p109 = scmp.eq.s32.totalorder %s24, 1
    %p110 = por %p108, %p109
    %p112 = scmp.ne.s32.totalorder %s97, %s111
    %p113 = scmp.eq.s32.totalorder %s24, 0
    %p114 = por %p112, %p113
    %s116 = sadd.s32 %s115, 1
    %p119 = scmp.eq.s32.totalorder %s18, 1
    %p120 = scmp.ne.s32.totalorder %s115, %s117
    %p121 = scmp.eq.s32.totalorder %s18, 0
    %p122 = por %p120, %p121
    %p123 = scmp.ne.s32.totalorder %s115, %s117
    %p124 = scmp.eq.s32.totalorder %s23, 1
    %p125 = por %p123, %p124
    %p126 = scmp.ne.s32.totalorder %s117, %s118
    %p127 = scmp.eq.s32.totalorder %s23, 0
    %p128 = por %p126, %p127
    %p129 = scmp.ne.s32.totalorder %s117, %s118
    %p130 = scmp.eq.s32.totalorder %s24, 1
    %p131 = por %p129, %p130
    %p133 = scmp.ne.s32.totalorder %s118, %s132
    %p134 = scmp.eq.s32.totalorder %s24, 0
    %p135 = por %p133, %p134
    %s137 = sadd.s32 %s136, 1
    %p140 = scmp.eq.s32.totalorder %s18, 1
    %p141 = scmp.ne.s32.totalorder %s136, %s138
    %p142 = scmp.eq.s32.totalorder %s18, 0
    %p143 = por %p141, %p142
    %p144 = scmp.ne.s32.totalorder %s136, %s138
    %p145 = scmp.eq.s32.totalorder %s23, 1
    %p146 = por %p144, %p145
    %p147 = scmp.ne.s32.totalorder %s138, %s139
    %p148 = scmp.eq.s32.totalorder %s23, 0
    %p149 = por %p147, %p148
    %p150 = scmp.ne.s32.totalorder %s138, %s139
    %p151 = scmp.eq.s32.totalorder %s24, 1
    %p152 = por %p150, %p151
    %p154 = scmp.ne.s32.totalorder %s139, %s153
    %p155 = scmp.eq.s32.totalorder %s24, 0
    %p156 = por %p154, %p155
    %s158 = sadd.s32 %s157, 1
    %p161 = scmp.eq.s32.totalorder %s18, 1
    %p162 = scmp.ne.s32.totalorder %s157, %s159
    %p163 = scmp.eq.s32.totalorder %s18, 0
    %p164 = por %p162, %p163
    %p165 = scmp.ne.s32.totalorder %s157, %s159
    %p166 = scmp.eq.s32.totalorder %s23, 1
    %p167 = por %p165, %p166
    %p168 = scmp.ne.s32.totalorder %s159, %s160
    %p169 = scmp.eq.s32.totalorder %s23, 0
    %p170 = por %p168, %p169
    %p171 = scmp.ne.s32.totalorder %s159, %s160
    %p172 = scmp.eq.s32.totalorder %s24, 1
    %p173 = por %p171, %p172
    %p175 = scmp.ne.s32.totalorder %s160, %s174
    %p176 = scmp.eq.s32.totalorder %s24, 0
    %p177 = por %p175, %p176
    %s179 = sadd.s32 %s178, 1
    %p182 = scmp.eq.s32.totalorder %s18, 1
    %p183 = scmp.ne.s32.totalorder %s178, %s180
    %p184 = scmp.eq.s32.totalorder %s18, 0
    %p185 = por %p183, %p184
    %p186 = scmp.ne.s32.totalorder %s178, %s180
    %p187 = scmp.eq.s32.totalorder %s23, 1
    %p188 = por %p186, %p187
    %p189 = scmp.ne.s32.totalorder %s180, %s181
    %p190 = scmp.eq.s32.totalorder %s23, 0
    %p191 = por %p189, %p190
    %p192 = scmp.ne.s32.totalorder %s180, %s181
    %p193 = scmp.eq.s32.totalorder %s24, 1
    %p194 = por %p192, %p193
    %p196 = scmp.ne.s32.totalorder %s181, %s195
    %p197 = scmp.eq.s32.totalorder %s24, 0
    %p198 = por %p196, %p197
    %s200 = sadd.s32 %s199, 1
    %p203 = scmp.eq.s32.totalorder %s18, 1
    %p204 = scmp.ne.s32.totalorder %s199, %s201
    %p205 = scmp.eq.s32.totalorder %s18, 0
    %p206 = por %p204, %p205
    %p207 = scmp.ne.s32.totalorder %s199, %s201
    %p208 = scmp.eq.s32.totalorder %s23, 1
    %p209 = por %p207, %p208
    %p210 = scmp.ne.s32.totalorder %s201, %s202
    %p211 = scmp.eq.s32.totalorder %s23, 0
    %p212 = por %p210, %p211
    %p213 = scmp.ne.s32.totalorder %s201, %s202
    %p214 = scmp.eq.s32.totalorder %s24, 1
    %p215 = por %p213, %p214
    %p217 = scmp.ne.s32.totalorder %s202, %s216
    %p218 = scmp.eq.s32.totalorder %s24, 0
    %p219 = por %p217, %p218
    %s221 = sadd.s32 %s220, 1
    %p224 = scmp.eq.s32.totalorder %s18, 1
    %p225 = scmp.ne.s32.totalorder %s220, %s222
    %p226 = scmp.eq.s32.totalorder %s18, 0
    %p227 = por %p225, %p226
    %p228 = scmp.ne.s32.totalorder %s220, %s222
    %p229 = scmp.eq.s32.totalorder %s23, 1
    %p230 = por %p228, %p229
    %p231 = scmp.ne.s32.totalorder %s222, %s223
    %p232 = scmp.eq.s32.totalorder %s23, 0
    %p233 = por %p231, %p232
    %p234 = scmp.ne.s32.totalorder %s222, %s223
    %p235 = scmp.eq.s32.totalorder %s24, 1
    %p236 = por %p234, %p235
    %p238 = scmp.ne.s32.totalorder %s223, %s237
    %p239 = scmp.eq.s32.totalorder %s24, 0
    %p240 = por %p238, %p239
    %s241 = ssub.s32 %s18, %s25
    %p242 = scmp.eq.s32.totalorder %s241, 0
    %s244 = sadd.s32 %s243, 1
    %s245 = scalar_select %p242, %s243, %s244
    %p248 = pneg %p242
    %p249 = scmp.eq.s32.totalorder %s18, 1
    %p250 = por %p248, %p249
    %p251 = scmp.ne.s32.totalorder %s243, %s246
    %p252 = scmp.eq.s32.totalorder %s18, 0
    %p253 = por %p251, %p252
    %p254 = scmp.ne.s32.totalorder %s243, %s246
    %p255 = scmp.eq.s32.totalorder %s23, 1
    %p256 = por %p254, %p255
    %p257 = scmp.ne.s32.totalorder %s246, %s247
    %p258 = scmp.eq.s32.totalorder %s23, 0
    %p259 = por %p257, %p258
    %p260 = scmp.ne.s32.totalorder %s246, %s247
    %p261 = scmp.eq.s32.totalorder %s24, 1
    %p262 = por %p260, %p261
    %p264 = scmp.ne.s32.totalorder %s247, %s263
    %p265 = scmp.eq.s32.totalorder %s24, 0
    %p266 = por %p264, %p265
    %p267 = scmp.le.s32.totalorder 1, %s18
    %p268 = scmp.lt.s32.totalorder %s18, 3
    %p269 = pnand %p267, %p268
    %p270 = pneg %p269
    // Predicated region
    $region9: #{tpu_custom_call.1} parent=5 // pred_check
      _
    $region10: #{tpu_custom_call.1} parent=5 // pred_check_branch
      %272 = sbr.rel (%p269) target = $region12
    $region11: #{tpu_custom_call.1} parent=5 // pred_region
      %s273 = ssub.s32 %s18, 1
      // Predicated region
      $region13: #{tpu_custom_call.1} parent=11 // pred_check
        %p274 = pneg %p65
      $region14: #{tpu_custom_call.1} parent=11 // pred_check_branch
        %276 = sbr.rel (%p274) target = $region16
      $region15: #{tpu_custom_call.1} parent=11 // pred_region
        _
      $region16: #{tpu_custom_call.1} parent=11 // pred_fallthru
        _
      // Predicated region
      $region17: #{tpu_custom_call.1} parent=11 // pred_check
        %p277 = pneg %p86
      $region18: #{tpu_custom_call.1} parent=11 // pred_check_branch
        %279 = sbr.rel (%p277) target = $region20
      $region19: #{tpu_custom_call.1} parent=11 // pred_region
        _
      $region20: #{tpu_custom_call.1} parent=11 // pred_fallthru
        _
      // Predicated region
      $region21: #{tpu_custom_call.1} parent=11 // pred_check
        %p280 = pneg %p107
      $region22: #{tpu_custom_call.1} parent=11 // pred_check_branch
        %282 = sbr.rel (%p280) target = $region24
      $region23: #{tpu_custom_call.1} parent=11 // pred_region
        _
      $region24: #{tpu_custom_call.1} parent=11 // pred_fallthru
        _
      // Predicated region
      $region25: #{tpu_custom_call.1} parent=11 // pred_check
        %p283 = pneg %p128
      $region26: #{tpu_custom_call.1} parent=11 // pred_check_branch
        %285 = sbr.rel (%p283) target = $region28
      $region27: #{tpu_custom_call.1} parent=11 // pred_region
        _
      $region28: #{tpu_custom_call.1} parent=11 // pred_fallthru
        _
      // Predicated region
      $region29: #{tpu_custom_call.1} parent=11 // pred_check
        %p286 = pneg %p149
      $region30: #{tpu_custom_call.1} parent=11 // pred_check_branch
        %288 = sbr.rel (%p286) target = $region32
      $region31: #{tpu_custom_call.1} parent=11 // pred_region
        _
      $region32: #{tpu_custom_call.1} parent=11 // pred_fallthru
        _
      // Predicated region
      $region33: #{tpu_custom_call.1} parent=11 // pred_check
        %p289 = pneg %p170
      $region34: #{tpu_custom_call.1} parent=11 // pred_check_branch
        %291 = sbr.rel (%p289) target = $region36
      $region35: #{tpu_custom_call.1} parent=11 // pred_region
        _
      $region36: #{tpu_custom_call.1} parent=11 // pred_fallthru
        _
      // Predicated region
      $region37: #{tpu_custom_call.1} parent=11 // pred_check
        %p292 = pneg %p191
      $region38: #{tpu_custom_call.1} parent=11 // pred_check_branch
        %294 = sbr.rel (%p292) target = $region40
      $region39: #{tpu_custom_call.1} parent=11 // pred_region
        _
      $region40: #{tpu_custom_call.1} parent=11 // pred_fallthru
        _
      // Predicated region
      $region41: #{tpu_custom_call.1} parent=11 // pred_check
        %p295 = pneg %p212
      $region42: #{tpu_custom_call.1} parent=11 // pred_check_branch
        %297 = sbr.rel (%p295) target = $region44
      $region43: #{tpu_custom_call.1} parent=11 // pred_region
        _
      $region44: #{tpu_custom_call.1} parent=11 // pred_fallthru
        _
      // Predicated region
      $region45: #{tpu_custom_call.1} parent=11 // pred_check
        %p298 = pneg %p233
      $region46: #{tpu_custom_call.1} parent=11 // pred_check_branch
        %300 = sbr.rel (%p298) target = $region48
      $region47: #{tpu_custom_call.1} parent=11 // pred_region
        _
      $region48: #{tpu_custom_call.1} parent=11 // pred_fallthru
        _
    $region12: #{tpu_custom_call.1} parent=5 // pred_fallthru
      _
    %p301 = scmp.lt.s32.totalorder %s18, 2
    // Predicated region
    $region49: #{tpu_custom_call.1} parent=5 // pred_check
      %p302 = pneg %p301
    $region50: #{tpu_custom_call.1} parent=5 // pred_check_branch
      %304 = sbr.rel (%p302) target = $region52
    $region51: #{tpu_custom_call.1} parent=5 // pred_region
      // Predicated region
      $region53: #{tpu_custom_call.1} parent=51 // pred_check
        %p305 = pneg %p38
      $region54: #{tpu_custom_call.1} parent=51 // pred_check_branch
        %307 = sbr.rel (%p305) target = $region56
      $region55: #{tpu_custom_call.1} parent=51 // pred_region
        %s308 = smul.u32 2, %s18
        %p309 = scmp.lt.s32.totalorder %s308, 3
        %s310 = scalar_select %p309, %s308, 3
        %s311 = smul.addr %s310, 8
        %s312 = scalar_lea.vmem %s0, %s311
        %s313 = smul.u32 2, %s18
      $region56: #{tpu_custom_call.1} parent=51 // pred_fallthru
        _
    $region52: #{tpu_custom_call.1} parent=5 // pred_fallthru
      _
    %p314 = scmp.le.s32.totalorder 1, %s18
    %p315 = scmp.lt.s32.totalorder %s18, 3
    %p316 = pnand %p314, %p315
    %p317 = pneg %p316
    // Predicated region
    $region57: #{tpu_custom_call.1} parent=5 // pred_check
      _
    $region58: #{tpu_custom_call.1} parent=5 // pred_check_branch
      %319 = sbr.rel (%p316) target = $region60
    $region59: #{tpu_custom_call.1} parent=5 // pred_region
      %s320 = ssub.s32 %s18, 1
      %s321 = smul.u32 2, %s23
      %p322 = scmp.lt.s32.totalorder %s321, 3
      %s323 = scalar_select %p322, %s321, 3
      %s324 = smul.addr %s323, 8
      %s325 = scalar_lea.vmem %s0, %s324
      %p326 = pneg %p44
      %p327 = pneg %p41
      %p328 = pneg %p65
      %p329 = pneg %p62
      %p330 = pneg %p86
      %p331 = pneg %p83
      %p332 = pneg %p107
      %p333 = pneg %p104
      %p334 = pneg %p128
      %p335 = pneg %p125
      %p336 = pneg %p149
      %p337 = pneg %p146
      %p338 = pneg %p170
      %p339 = pneg %p167
      %p340 = pneg %p191
      %p341 = pneg %p188
      %p342 = pneg %p212
      %p343 = pneg %p209
      %p344 = pneg %p233
      %p345 = pneg %p230
      %p346 = pneg %p259
      %p347 = pneg %p256
      %s348 = smul.u32 2, %s23
      %p349 = scmp.lt.s32.totalorder %s348, 3
      %s350 = scalar_select %p349, %s348, 3
      %s351 = smul.addr %s350, 8
      %s352 = scalar_lea.vmem %s10, %s351
      %s353 = smul.u32 2, %s23
      %p354 = scmp.lt.s32.totalorder %s353, 3
      %s355 = scalar_select %p354, %s353, 3
      %s356 = smul.addr %s355, 8
      %s357 = scalar_lea.vmem %s0, %s356
      %s358 = smul.u32 2, %s23
      %s359 = smul.u32 2, %s23
      %p360 = scmp.lt.s32.totalorder %s359, 3
      %s361 = scalar_select %p360, %s359, 3
      %s362 = smul.addr %s361, 8
      %s363 = scalar_lea.vmem %s10, %s362
      %s364 = smul.u32 2, %s23
      %v365 = vld [vmem:[%s1] sm:$0xff]
      %v366 = vld [vmem:[%s1 + $0x8] sm:$0xff]
      %v367 = vld [vmem:[%s357] sm:$0xff]
      %v368 = vld [vmem:[%s357 + $0x8] sm:$0xff]
      %v369 = vld [vmem:[%s2] sm:$0xff]
      %v370 = vld [vmem:[%s3] sm:$0x1]
      %v372 = vlaneseq
      %v373 = vshrl.u32 %v372, 7
      %v374 = vsub.s32 0, %v373
      %v375 = vrot.slane %v370, %v374
      %vm377 = vcmask 64512
      %v379 = vsel %vm377, %v367, 0
      %v382 = vsel %vm377, %v368, 0
      %384 = vmatprep.subr.mxu0 0.0
      %385 = vmatpush1.msra.mxu0 %v369
      %386 = vmatprep.subr.mxu0 0.0
      %387 = vmatpush1.msra.mxu0 0.0
      %388 = vmatprep.subr.mxu0 0.0
      %389 = vmatpush1.msra.mxu0 0.0
      %390 = vmatprep.subr.mxu0 0.0
      %391 = vmatpush1.msra.mxu0 0.0
      %392 = vmatprep.subr.mxu0 0.0
      %393 = vmatpush1.msra.mxu0 0.0
      %394 = vmatprep.subr.mxu0 0.0
      %395 = vmatpush1.msra.mxu0 0.0
      %396 = vmatprep.subr.mxu0 0.0
      %397 = vmatpush1.msra.mxu0 0.0
      %398 = vmatprep.subr.mxu0 0.0
      %399 = vmatpush1.msra.mxu0 0.0
      %400 = vmatprep.subr.mxu0 0.0
      %401 = vmatpush1.msra.mxu0 0.0
      %402 = vmatprep.subr.mxu0 0.0
      %403 = vmatpush1.msra.mxu0 0.0
      %404 = vmatprep.subr.mxu0 0.0
      %405 = vmatpush1.msra.mxu0 0.0
      %406 = vmatprep.subr.mxu0 0.0
      %407 = vmatpush1.msra.mxu0 0.0
      %408 = vmatprep.subr.mxu0 0.0
      %409 = vmatpush1.msra.mxu0 0.0
      %410 = vmatprep.subr.mxu0 0.0
      %411 = vmatpush1.msra.mxu0 0.0
      %412 = vmatprep.subr.mxu0 0.0
      %413 = vmatpush1.msra.mxu0 0.0
      %414 = vmatprep.subr.mxu0 0.0
      %415 = vmatpush1.msra.mxu0 0.0
      %416 = vmatprep.subr.mxu0 0.0
      %417 = vmatpush1.msra.mxu0 0.0
      %418 = vmatprep.subr.mxu0 0.0
      %419 = vmatpush1.msra.mxu0 0.0
      %420 = vmatprep.subr.mxu0 0.0
      %421 = vmatpush1.msra.mxu0 0.0
      %422 = vmatprep.subr.mxu0 0.0
      %423 = vmatpush1.msra.mxu0 0.0
      %424 = vmatprep.subr.mxu0 0.0
      %425 = vmatpush1.msra.mxu0 0.0
      %426 = vmatprep.subr.mxu0 0.0
      %427 = vmatpush1.msra.mxu0 0.0
      %428 = vmatprep.subr.mxu0 0.0
      %429 = vmatpush1.msra.mxu0 0.0
      %430 = vmatprep.subr.mxu0 0.0
      %431 = vmatpush1.msra.mxu0 0.0
      %432 = vmatprep.subr.mxu0 0.0
      %433 = vmatpush1.msra.mxu0 0.0
      %434 = vmatprep.subr.mxu0 0.0
      %435 = vmatpush1.msra.mxu0 0.0
      %436 = vmatprep.subr.mxu0 0.0
      %437 = vmatpush1.msra.mxu0 0.0
      %438 = vmatprep.subr.mxu0 0.0
      %439 = vmatpush1.msra.mxu0 0.0
      %440 = vmatprep.subr.mxu0 0.0
      %441 = vmatpush1.msra.mxu0 0.0
      %442 = vmatprep.subr.mxu0 0.0
      %443 = vmatpush1.msra.mxu0 0.0
      %444 = vmatprep.subr.mxu0 0.0
      %445 = vmatpush1.msra.mxu0 0.0
      %446 = vmatprep.subr.mxu0 0.0
      %447 = vmatpush1.msra.mxu0 0.0
      %448 = vmatprep.mubr.f32.mxu0 0.0
      %449 = vmatmul.mubr.f32.gmra.mrb[0].mxu0 %v379
      %v450 = vpop.f32.mrb[0].mxu0
      %v451 = vadd.f32 %v375, %v450
      %v452 = vpop.f32.mrb[0].mxu0
      %453 = vmatprep.mubr.f32.mxu0 0.0
      %454 = vmatmul.mubr.f32.gmra.mrb[0].mxu0 %v382
      %v455 = vpop.f32.mrb[0].mxu0
      %v456 = vadd.f32 %v375, %v455
      %v457 = vpop.f32.mrb[0].mxu0
      %458 = vdwg.mxu0
      %v459 = vmax.f32 %v451, 0.0
      %v460 = vmax.f32 %v456, 0.0
      %v461 = vld [vmem:[%s4] sm:$0xff]
      %v462 = vld [vmem:[%s4 + $0x8] sm:$0xff]
      %v463 = vld [vmem:[%s4 + $0x10] sm:$0xff]
      %v464 = vld [vmem:[%s4 + $0x18] sm:$0xff]
      %v465 = vld [vmem:[%s4 + $0x20] sm:$0xff]
      %v466 = vld [vmem:[%s4 + $0x28] sm:$0xff]
      %v467 = vld [vmem:[%s4 + $0x30] sm:$0xff]
      %v468 = vld [vmem:[%s4 + $0x38] sm:$0xff]
      %v469 = vld [vmem:[%s4 + $0x40] sm:$0xff]
      %v470 = vld [vmem:[%s4 + $0x48] sm:$0xff]
      %v471 = vld [vmem:[%s4 + $0x50] sm:$0xff]
      %v472 = vld [vmem:[%s4 + $0x58] sm:$0xff]
      %vm473 = vcmask 785408
      %v475 = vsel %vm473, %v459, 0
      %v478 = vsel %vm473, %v460, 0
      %480 = vmatprep.subr.mxu0 0.0
      %481 = vmatpush1.msra.mxu0 %v461
      %482 = vmatprep.subr.mxu0 0.0
      %483 = vmatpush1.msra.mxu0 %v462
      %484 = vmatprep.subr.mxu0 0.0
      %485 = vmatpush1.msra.mxu0 %v463
      %486 = vmatprep.subr.mxu0 0.0
      %487 = vmatpush1.msra.mxu0 %v464
      %488 = vmatprep.subr.mxu0 0.0
      %489 = vmatpush1.msra.mxu0 %v465
      %490 = vmatprep.subr.mxu0 0.0
      %491 = vmatpush1.msra.mxu0 %v466
      %492 = vmatprep.subr.mxu0 0.0
      %493 = vmatpush1.msra.mxu0 %v467
      %494 = vmatprep.subr.mxu0 0.0
      %495 = vmatpush1.msra.mxu0 %v468
      %496 = vmatprep.subr.mxu0 0.0
      %497 = vmatpush1.msra.mxu0 %v469
      %498 = vmatprep.subr.mxu0 0.0
      %499 = vmatpush1.msra.mxu0 %v470
      %500 = vmatprep.subr.mxu0 0.0
      %501 = vmatpush1.msra.mxu0 %v471
      %502 = vmatprep.subr.mxu0 0.0
      %503 = vmatpush1.msra.mxu0 %v472
      %504 = vmatprep.subr.mxu0 0.0
      %505 = vmatpush1.msra.mxu0 0.0
      %506 = vmatprep.subr.mxu0 0.0
      %507 = vmatpush1.msra.mxu0 0.0
      %508 = vmatprep.subr.mxu0 0.0
      %509 = vmatpush1.msra.mxu0 0.0
      %510 = vmatprep.subr.mxu0 0.0
      %511 = vmatpush1.msra.mxu0 0.0
      %512 = vmatprep.subr.mxu0 0.0
      %513 = vmatpush1.msra.mxu0 0.0
      %514 = vmatprep.subr.mxu0 0.0
      %515 = vmatpush1.msra.mxu0 0.0
      %516 = vmatprep.subr.mxu0 0.0
      %517 = vmatpush1.msra.mxu0 0.0
      %518 = vmatprep.subr.mxu0 0.0
      %519 = vmatpush1.msra.mxu0 0.0
      %520 = vmatprep.subr.mxu0 0.0
      %521 = vmatpush1.msra.mxu0 0.0
      %522 = vmatprep.subr.mxu0 0.0
      %523 = vmatpush1.msra.mxu0 0.0
      %524 = vmatprep.subr.mxu0 0.0
      %525 = vmatpush1.msra.mxu0 0.0
      %526 = vmatprep.subr.mxu0 0.0
      %527 = vmatpush1.msra.mxu0 0.0
      %528 = vmatprep.subr.mxu0 0.0
      %529 = vmatpush1.msra.mxu0 0.0
      %530 = vmatprep.subr.mxu0 0.0
      %531 = vmatpush1.msra.mxu0 0.0
      %532 = vmatprep.subr.mxu0 0.0
      %533 = vmatpush1.msra.mxu0 0.0
      %534 = vmatprep.subr.mxu0 0.0
      %535 = vmatpush1.msra.mxu0 0.0
      %536 = vmatprep.subr.mxu0 0.0
      %537 = vmatpush1.msra.mxu0 0.0
      %538 = vmatprep.subr.mxu0 0.0
      %539 = vmatpush1.msra.mxu0 0.0
      %540 = vmatprep.subr.mxu0 0.0
      %541 = vmatpush1.msra.mxu0 0.0
      %542 = vmatprep.subr.mxu0 0.0
      %543 = vmatpush1.msra.mxu0 0.0
      %544 = vmatprep.mubr.f32.mxu0 0.0
      %545 = vmatmul.mubr.f32.gmra.mrb[0].mxu0 %v475
      %v546 = vpop.f32.mrb[0].mxu0
      %v547 = vadd.f32 0.0, %v546
      %v548 = vpop.f32.mrb[0].mxu0
      %549 = vmatprep.mubr.f32.mxu0 0.0
      %550 = vmatmul.mubr.f32.gmra.mrb[0].mxu0 %v478
      %v551 = vpop.f32.mrb[0].mxu0
      %v552 = vadd.f32 0.0, %v551
      %v553 = vpop.f32.mrb[0].mxu0
      %554 = vdwg.mxu0
      %vm555 = vcmask 130048
      %v557 = vsel %vm555, %v365, 0
      %v560 = vsel %vm555, %v366, 0
      %562 = vmatprep.subr.mxu0 0.0
      %563 = vmatpush1.msra.mxu0 %v547
      %564 = vmatprep.subr.mxu0 0.0
      %565 = vmatpush1.msra.mxu0 %v552
      %566 = vmatprep.subr.mxu0 0.0
      %567 = vmatpush1.msra.mxu0 0.0
      %568 = vmatprep.subr.mxu0 0.0
      %569 = vmatpush1.msra.mxu0 0.0
      %570 = vmatprep.subr.mxu0 0.0
      %571 = vmatpush1.msra.mxu0 0.0
      %572 = vmatprep.subr.mxu0 0.0
      %573 = vmatpush1.msra.mxu0 0.0
      %574 = vmatprep.subr.mxu0 0.0
      %575 = vmatpush1.msra.mxu0 0.0
      %576 = vmatprep.subr.mxu0 0.0
      %577 = vmatpush1.msra.mxu0 0.0
      %578 = vmatprep.subr.mxu0 0.0
      %579 = vmatpush1.msra.mxu0 0.0
      %580 = vmatprep.subr.mxu0 0.0
      %581 = vmatpush1.msra.mxu0 0.0
      %582 = vmatprep.subr.mxu0 0.0
      %583 = vmatpush1.msra.mxu0 0.0
      %584 = vmatprep.subr.mxu0 0.0
      %585 = vmatpush1.msra.mxu0 0.0
      %586 = vmatprep.subr.mxu0 0.0
      %587 = vmatpush1.msra.mxu0 0.0
      %588 = vmatprep.subr.mxu0 0.0
      %589 = vmatpush1.msra.mxu0 0.0
      %590 = vmatprep.subr.mxu0 0.0
      %591 = vmatpush1.msra.mxu0 0.0
      %592 = vmatprep.subr.mxu0 0.0
      %593 = vmatpush1.msra.mxu0 0.0
      %594 = vmatprep.subr.mxu0 0.0
      %595 = vmatpush1.msra.mxu0 0.0
      %596 = vmatprep.subr.mxu0 0.0
      %597 = vmatpush1.msra.mxu0 0.0
      %598 = vmatprep.subr.mxu0 0.0
      %599 = vmatpush1.msra.mxu0 0.0
      %600 = vmatprep.subr.mxu0 0.0
      %601 = vmatpush1.msra.mxu0 0.0
      %602 = vmatprep.subr.mxu0 0.0
      %603 = vmatpush1.msra.mxu0 0.0
      %604 = vmatprep.subr.mxu0 0.0
      %605 = vmatpush1.msra.mxu0 0.0
      %606 = vmatprep.subr.mxu0 0.0
      %607 = vmatpush1.msra.mxu0 0.0
      %608 = vmatprep.subr.mxu0 0.0
      %609 = vmatpush1.msra.mxu0 0.0
      %610 = vmatprep.subr.mxu0 0.0
      %611 = vmatpush1.msra.mxu0 0.0
      %612 = vmatprep.subr.mxu0 0.0
      %613 = vmatpush1.msra.mxu0 0.0
      %614 = vmatprep.subr.mxu0 0.0
      %615 = vmatpush1.msra.mxu0 0.0
      %616 = vmatprep.subr.mxu0 0.0
      %617 = vmatpush1.msra.mxu0 0.0
      %618 = vmatprep.subr.mxu0 0.0
      %619 = vmatpush1.msra.mxu0 0.0
      %620 = vmatprep.subr.mxu0 0.0
      %621 = vmatpush1.msra.mxu0 0.0
      %622 = vmatprep.subr.mxu0 0.0
      %623 = vmatpush1.msra.mxu0 0.0
      %624 = vmatprep.subr.mxu0 0.0
      %625 = vmatpush1.msra.mxu0 0.0
      %626 = vmatprep.mubr.f32.mxu0 0.0
      %627 = vmatmul.mubr.f32.gmra.mrb[0].mxu0 %v557
      %v628 = vpop.f32.mrb[0].mxu0
      %v629 = vadd.f32 0.0, %v628
      %v630 = vpop.f32.mrb[0].mxu0
      %631 = vmatprep.mubr.f32.mxu0 0.0
      %632 = vmatmul.mubr.f32.gmra.mrb[0].mxu0 %v560
      %v633 = vpop.f32.mrb[0].mxu0
      %v634 = vadd.f32 0.0, %v633
      %v635 = vpop.f32.mrb[0].mxu0
      %636 = vdwg.mxu0
      %v637 = vmax.f32 %v629, 0.0
      %v638 = vmax.f32 %v634, 0.0
      %v639 = vld [vmem:[%s5] sm:$0xff]
      %v640 = vld [vmem:[%s5 + $0x8] sm:$0xff]
      %v641 = vld [vmem:[%s5 + $0x10] sm:$0xff]
      %v642 = vld [vmem:[%s5 + $0x18] sm:$0xff]
      %v643 = vld [vmem:[%s5 + $0x20] sm:$0xff]
      %v644 = vld [vmem:[%s5 + $0x28] sm:$0xff]
      %v645 = vld [vmem:[%s5 + $0x30] sm:$0xff]
      %v646 = vld [vmem:[%s5 + $0x38] sm:$0xff]
      %v647 = vld [vmem:[%s5 + $0x40] sm:$0xff]
      %v648 = vld [vmem:[%s5 + $0x48] sm:$0xff]
      %v649 = vld [vmem:[%s5 + $0x50] sm:$0xff]
      %v650 = vld [vmem:[%s5 + $0x58] sm:$0xff]
      %v652 = vsel %vm473, %v637, 0
      %v655 = vsel %vm473, %v638, 0
      %657 = vmatprep.subr.mxu0 0.0
      %658 = vmatpush1.msra.mxu0 %v639
      %659 = vmatprep.subr.mxu0 0.0
      %660 = vmatpush1.msra.mxu0 %v640
      %661 = vmatprep.subr.mxu0 0.0
      %662 = vmatpush1.msra.mxu0 %v641
      %663 = vmatprep.subr.mxu0 0.0
      %664 = vmatpush1.msra.mxu0 %v642
      %665 = vmatprep.subr.mxu0 0.0
      %666 = vmatpush1.msra.mxu0 %v643
      %667 = vmatprep.subr.mxu0 0.0
      %668 = vmatpush1.msra.mxu0 %v644
      %669 = vmatprep.subr.mxu0 0.0
      %670 = vmatpush1.msra.mxu0 %v645
      %671 = vmatprep.subr.mxu0 0.0
      %672 = vmatpush1.msra.mxu0 %v646
      %673 = vmatprep.subr.mxu0 0.0
      %674 = vmatpush1.msra.mxu0 %v647
      %675 = vmatprep.subr.mxu0 0.0
      %676 = vmatpush1.msra.mxu0 %v648
      %677 = vmatprep.subr.mxu0 0.0
      %678 = vmatpush1.msra.mxu0 %v649
      %679 = vmatprep.subr.mxu0 0.0
      %680 = vmatpush1.msra.mxu0 %v650
      %681 = vmatprep.subr.mxu0 0.0
      %682 = vmatpush1.msra.mxu0 0.0
      %683 = vmatprep.subr.mxu0 0.0
      %684 = vmatpush1.msra.mxu0 0.0
      %685 = vmatprep.subr.mxu0 0.0
      %686 = vmatpush1.msra.mxu0 0.0
      %687 = vmatprep.subr.mxu0 0.0
      %688 = vmatpush1.msra.mxu0 0.0
      %689 = vmatprep.subr.mxu0 0.0
      %690 = vmatpush1.msra.mxu0 0.0
      %691 = vmatprep.subr.mxu0 0.0
      %692 = vmatpush1.msra.mxu0 0.0
      %693 = vmatprep.subr.mxu0 0.0
      %694 = vmatpush1.msra.mxu0 0.0
      %695 = vmatprep.subr.mxu0 0.0
      %696 = vmatpush1.msra.mxu0 0.0
      %697 = vmatprep.subr.mxu0 0.0
      %698 = vmatpush1.msra.mxu0 0.0
      %699 = vmatprep.subr.mxu0 0.0
      %700 = vmatpush1.msra.mxu0 0.0
      %701 = vmatprep.subr.mxu0 0.0
      %702 = vmatpush1.msra.mxu0 0.0
      %703 = vmatprep.subr.mxu0 0.0
      %704 = vmatpush1.msra.mxu0 0.0
      %705 = vmatprep.subr.mxu0 0.0
      %706 = vmatpush1.msra.mxu0 0.0
      %707 = vmatprep.subr.mxu0 0.0
      %708 = vmatpush1.msra.mxu0 0.0
      %709 = vmatprep.subr.mxu0 0.0
      %710 = vmatpush1.msra.mxu0 0.0
      %711 = vmatprep.subr.mxu0 0.0
      %712 = vmatpush1.msra.mxu0 0.0
      %713 = vmatprep.subr.mxu0 0.0
      %714 = vmatpush1.msra.mxu0 0.0
      %715 = vmatprep.subr.mxu0 0.0
      %716 = vmatpush1.msra.mxu0 0.0
      %717 = vmatprep.subr.mxu0 0.0
      %718 = vmatpush1.msra.mxu0 0.0
      %719 = vmatprep.subr.mxu0 0.0
      %720 = vmatpush1.msra.mxu0 0.0
      %721 = vmatprep.mubr.f32.mxu0 0.0
      %722 = vmatmul.mubr.f32.gmra.mrb[0].mxu0 %v652
      %v723 = vpop.f32.mrb[0].mxu0
      %v724 = vadd.f32 0.0, %v723
      %v725 = vpop.f32.mrb[0].mxu0
      %726 = vmatprep.mubr.f32.mxu0 0.0
      %727 = vmatmul.mubr.f32.gmra.mrb[0].mxu0 %v655
      %v728 = vpop.f32.mrb[0].mxu0
      %v729 = vadd.f32 0.0, %v728
      %v730 = vpop.f32.mrb[0].mxu0
      %731 = vdwg.mxu0
      %732 = vmatprep.subr.mxu0 0.0
      %733 = vmatpush1.msra.mxu0 %v724
      %734 = vmatprep.subr.mxu0 0.0
      %735 = vmatpush1.msra.mxu0 %v729
      %736 = vmatprep.subr.mxu0 0.0
      %737 = vmatpush1.msra.mxu0 0.0
      %738 = vmatprep.subr.mxu0 0.0
      %739 = vmatpush1.msra.mxu0 0.0
      %740 = vmatprep.subr.mxu0 0.0
      %741 = vmatpush1.msra.mxu0 0.0
      %742 = vmatprep.subr.mxu0 0.0
      %743 = vmatpush1.msra.mxu0 0.0
      %744 = vmatprep.subr.mxu0 0.0
      %745 = vmatpush1.msra.mxu0 0.0
      %746 = vmatprep.subr.mxu0 0.0
      %747 = vmatpush1.msra.mxu0 0.0
      %748 = vmatprep.subr.mxu0 0.0
      %749 = vmatpush1.msra.mxu0 0.0
      %750 = vmatprep.subr.mxu0 0.0
      %751 = vmatpush1.msra.mxu0 0.0
      %752 = vmatprep.subr.mxu0 0.0
      %753 = vmatpush1.msra.mxu0 0.0
      %754 = vmatprep.subr.mxu0 0.0
      %755 = vmatpush1.msra.mxu0 0.0
      %756 = vmatprep.subr.mxu0 0.0
      %757 = vmatpush1.msra.mxu0 0.0
      %758 = vmatprep.subr.mxu0 0.0
      %759 = vmatpush1.msra.mxu0 0.0
      %760 = vmatprep.subr.mxu0 0.0
      %761 = vmatpush1.msra.mxu0 0.0
      %762 = vmatprep.subr.mxu0 0.0
      %763 = vmatpush1.msra.mxu0 0.0
      %764 = vmatprep.subr.mxu0 0.0
      %765 = vmatpush1.msra.mxu0 0.0
      %766 = vmatprep.subr.mxu0 0.0
      %767 = vmatpush1.msra.mxu0 0.0
      %768 = vmatprep.subr.mxu0 0.0
      %769 = vmatpush1.msra.mxu0 0.0
      %770 = vmatprep.subr.mxu0 0.0
      %771 = vmatpush1.msra.mxu0 0.0
      %772 = vmatprep.subr.mxu0 0.0
      %773 = vmatpush1.msra.mxu0 0.0
      %774 = vmatprep.subr.mxu0 0.0
      %775 = vmatpush1.msra.mxu0 0.0
      %776 = vmatprep.subr.mxu0 0.0
      %777 = vmatpush1.msra.mxu0 0.0
      %778 = vmatprep.subr.mxu0 0.0
      %779 = vmatpush1.msra.mxu0 0.0
      %780 = vmatprep.subr.mxu0 0.0
      %781 = vmatpush1.msra.mxu0 0.0
      %782 = vmatprep.subr.mxu0 0.0
      %783 = vmatpush1.msra.mxu0 0.0
      %784 = vmatprep.subr.mxu0 0.0
      %785 = vmatpush1.msra.mxu0 0.0
      %786 = vmatprep.subr.mxu0 0.0
      %787 = vmatpush1.msra.mxu0 0.0
      %788 = vmatprep.subr.mxu0 0.0
      %789 = vmatpush1.msra.mxu0 0.0
      %790 = vmatprep.subr.mxu0 0.0
      %791 = vmatpush1.msra.mxu0 0.0
      %792 = vmatprep.subr.mxu0 0.0
      %793 = vmatpush1.msra.mxu0 0.0
      %794 = vmatprep.subr.mxu0 0.0
      %795 = vmatpush1.msra.mxu0 0.0
      %796 = vmatprep.mubr.f32.mxu0 0.0
      %797 = vmatmul.mubr.f32.gmra.mrb[0].mxu0 %v557
      %v798 = vpop.f32.mrb[0].mxu0
      %v799 = vadd.f32 0.0, %v798
      %v800 = vpop.f32.mrb[0].mxu0
      %801 = vmatprep.mubr.f32.mxu0 0.0
      %802 = vmatmul.mubr.f32.gmra.mrb[0].mxu0 %v560
      %v803 = vpop.f32.mrb[0].mxu0
      %v804 = vadd.f32 0.0, %v803
      %v805 = vpop.f32.mrb[0].mxu0
      %806 = vdwg.mxu0
      %v807 = vmax.f32 %v799, 0.0
      %v808 = vmax.f32 %v804, 0.0
      %v809 = vld [vmem:[%s6] sm:$0xff]
      %v810 = vld [vmem:[%s6 + $0x8] sm:$0xff]
      %v811 = vld [vmem:[%s6 + $0x10] sm:$0xff]
      %v812 = vld [vmem:[%s6 + $0x18] sm:$0xff]
      %v813 = vld [vmem:[%s6 + $0x20] sm:$0xff]
      %v814 = vld [vmem:[%s6 + $0x28] sm:$0xff]
      %v815 = vld [vmem:[%s6 + $0x30] sm:$0xff]
      %v816 = vld [vmem:[%s6 + $0x38] sm:$0xff]
      %v817 = vld [vmem:[%s6 + $0x40] sm:$0xff]
      %v818 = vld [vmem:[%s6 + $0x48] sm:$0xff]
      %v819 = vld [vmem:[%s6 + $0x50] sm:$0xff]
      %v820 = vld [vmem:[%s6 + $0x58] sm:$0xff]
      %v821 = vld [vmem:[%s7] sm:$0x1]
      %v823 = vlaneseq
      %v824 = vshrl.u32 %v823, 7
      %v825 = vsub.s32 0, %v824
      %v826 = vrot.slane %v821, %v825
      %v829 = vsel %vm473, %v807, 0
      %v832 = vsel %vm473, %v808, 0
      %834 = vmatprep.subr.mxu0 0.0
      %835 = vmatpush1.msra.mxu0 %v809
      %836 = vmatprep.subr.mxu0 0.0
      %837 = vmatpush1.msra.mxu0 %v810
      %838 = vmatprep.subr.mxu0 0.0
      %839 = vmatpush1.msra.mxu0 %v811
      %840 = vmatprep.subr.mxu0 0.0
      %841 = vmatpush1.msra.mxu0 %v812
      %842 = vmatprep.subr.mxu0 0.0
      %843 = vmatpush1.msra.mxu0 %v813
      %844 = vmatprep.subr.mxu0 0.0
      %845 = vmatpush1.msra.mxu0 %v814
      %846 = vmatprep.subr.mxu0 0.0
      %847 = vmatpush1.msra.mxu0 %v815
      %848 = vmatprep.subr.mxu0 0.0
      %849 = vmatpush1.msra.mxu0 %v816
      %850 = vmatprep.subr.mxu0 0.0
      %851 = vmatpush1.msra.mxu0 %v817
      %852 = vmatprep.subr.mxu0 0.0
      %853 = vmatpush1.msra.mxu0 %v818
      %854 = vmatprep.subr.mxu0 0.0
      %855 = vmatpush1.msra.mxu0 %v819
      %856 = vmatprep.subr.mxu0 0.0
      %857 = vmatpush1.msra.mxu0 %v820
      %858 = vmatprep.subr.mxu0 0.0
      %859 = vmatpush1.msra.mxu0 0.0
      %860 = vmatprep.subr.mxu0 0.0
      %861 = vmatpush1.msra.mxu0 0.0
      %862 = vmatprep.subr.mxu0 0.0
      %863 = vmatpush1.msra.mxu0 0.0
      %864 = vmatprep.subr.mxu0 0.0
      %865 = vmatpush1.msra.mxu0 0.0
      %866 = vmatprep.subr.mxu0 0.0
      %867 = vmatpush1.msra.mxu0 0.0
      %868 = vmatprep.subr.mxu0 0.0
      %869 = vmatpush1.msra.mxu0 0.0
      %870 = vmatprep.subr.mxu0 0.0
      %871 = vmatpush1.msra.mxu0 0.0
      %872 = vmatprep.subr.mxu0 0.0
      %873 = vmatpush1.msra.mxu0 0.0
      %874 = vmatprep.subr.mxu0 0.0
      %875 = vmatpush1.msra.mxu0 0.0
      %876 = vmatprep.subr.mxu0 0.0
      %877 = vmatpush1.msra.mxu0 0.0
      %878 = vmatprep.subr.mxu0 0.0
      %879 = vmatpush1.msra.mxu0 0.0
      %880 = vmatprep.subr.mxu0 0.0
      %881 = vmatpush1.msra.mxu0 0.0
      %882 = vmatprep.subr.mxu0 0.0
      %883 = vmatpush1.msra.mxu0 0.0
      %884 = vmatprep.subr.mxu0 0.0
      %885 = vmatpush1.msra.mxu0 0.0
      %886 = vmatprep.subr.mxu0 0.0
      %887 = vmatpush1.msra.mxu0 0.0
      %888 = vmatprep.subr.mxu0 0.0
      %889 = vmatpush1.msra.mxu0 0.0
      %890 = vmatprep.subr.mxu0 0.0
      %891 = vmatpush1.msra.mxu0 0.0
      %892 = vmatprep.subr.mxu0 0.0
      %893 = vmatpush1.msra.mxu0 0.0
      %894 = vmatprep.subr.mxu0 0.0
      %895 = vmatpush1.msra.mxu0 0.0
      %896 = vmatprep.subr.mxu0 0.0
      %897 = vmatpush1.msra.mxu0 0.0
      %898 = vmatprep.mubr.f32.mxu0 0.0
      %899 = vmatmul.mubr.f32.gmra.mrb[0].mxu0 %v829
      %v900 = vpop.f32.mrb[0].mxu0
      %v901 = vadd.f32 %v826, %v900
      %v902 = vpop.f32.mrb[0].mxu0
      %903 = vmatprep.mubr.f32.mxu0 0.0
      %904 = vmatmul.mubr.f32.gmra.mrb[0].mxu0 %v832
      %v905 = vpop.f32.mrb[0].mxu0
      %v906 = vadd.f32 %v826, %v905
      %v907 = vpop.f32.mrb[0].mxu0
      %908 = vdwg.mxu0
      %v909 = vmax.f32 %v901, 0.0
      %v910 = vmax.f32 %v906, 0.0
      %v911 = vld [vmem:[%s8] sm:$0xff]
      %v912 = vld [vmem:[%s8 + $0x8] sm:$0xff]
      %v913 = vld [vmem:[%s8 + $0x10] sm:$0xff]
      %v914 = vld [vmem:[%s8 + $0x18] sm:$0xff]
      %v915 = vld [vmem:[%s8 + $0x20] sm:$0xff]
      %v916 = vld [vmem:[%s8 + $0x28] sm:$0xff]
      %v917 = vld [vmem:[%s8 + $0x30] sm:$0xff]
      %v918 = vld [vmem:[%s8 + $0x38] sm:$0xff]
      %v919 = vld [vmem:[#allocation2] sm:$0x1]
      %v921 = vlaneseq
      %v922 = vshrl.u32 %v921, 7
      %v923 = vsub.s32 0, %v922
      %v924 = vrot.slane %v919, %v923
      %vm926 = vcmask 523264
      %v928 = vsel %vm926, %v909, 0
      %v931 = vsel %vm926, %v910, 0
      %933 = vmatprep.subr.mxu0 0.0
      %934 = vmatpush1.msra.mxu0 %v911
      %935 = vmatprep.subr.mxu0 0.0
      %936 = vmatpush1.msra.mxu0 %v912
      %937 = vmatprep.subr.mxu0 0.0
      %938 = vmatpush1.msra.mxu0 %v913
      %939 = vmatprep.subr.mxu0 0.0
      %940 = vmatpush1.msra.mxu0 %v914
      %941 = vmatprep.subr.mxu0 0.0
      %942 = vmatpush1.msra.mxu0 %v915
      %943 = vmatprep.subr.mxu0 0.0
      %944 = vmatpush1.msra.mxu0 %v916
      %945 = vmatprep.subr.mxu0 0.0
      %946 = vmatpush1.msra.mxu0 %v917
      %947 = vmatprep.subr.mxu0 0.0
      %948 = vmatpush1.msra.mxu0 %v918
      %949 = vmatprep.subr.mxu0 0.0
      %950 = vmatpush1.msra.mxu0 0.0
      %951 = vmatprep.subr.mxu0 0.0
      %952 = vmatpush1.msra.mxu0 0.0
      %953 = vmatprep.subr.mxu0 0.0
      %954 = vmatpush1.msra.mxu0 0.0
      %955 = vmatprep.subr.mxu0 0.0
      %956 = vmatpush1.msra.mxu0 0.0
      %957 = vmatprep.subr.mxu0 0.0
      %958 = vmatpush1.msra.mxu0 0.0
      %959 = vmatprep.subr.mxu0 0.0
      %960 = vmatpush1.msra.mxu0 0.0
      %961 = vmatprep.subr.mxu0 0.0
      %962 = vmatpush1.msra.mxu0 0.0
      %963 = vmatprep.subr.mxu0 0.0
      %964 = vmatpush1.msra.mxu0 0.0
      %965 = vmatprep.subr.mxu0 0.0
      %966 = vmatpush1.msra.mxu0 0.0
      %967 = vmatprep.subr.mxu0 0.0
      %968 = vmatpush1.msra.mxu0 0.0
      %969 = vmatprep.subr.mxu0 0.0
      %970 = vmatpush1.msra.mxu0 0.0
      %971 = vmatprep.subr.mxu0 0.0
      %972 = vmatpush1.msra.mxu0 0.0
      %973 = vmatprep.subr.mxu0 0.0
      %974 = vmatpush1.msra.mxu0 0.0
      %975 = vmatprep.subr.mxu0 0.0
      %976 = vmatpush1.msra.mxu0 0.0
      %977 = vmatprep.subr.mxu0 0.0
      %978 = vmatpush1.msra.mxu0 0.0
      %979 = vmatprep.subr.mxu0 0.0
      %980 = vmatpush1.msra.mxu0 0.0
      %981 = vmatprep.subr.mxu0 0.0
      %982 = vmatpush1.msra.mxu0 0.0
      %983 = vmatprep.subr.mxu0 0.0
      %984 = vmatpush1.msra.mxu0 0.0
      %985 = vmatprep.subr.mxu0 0.0
      %986 = vmatpush1.msra.mxu0 0.0
      %987 = vmatprep.subr.mxu0 0.0
      %988 = vmatpush1.msra.mxu0 0.0
      %989 = vmatprep.subr.mxu0 0.0
      %990 = vmatpush1.msra.mxu0 0.0
      %991 = vmatprep.subr.mxu0 0.0
      %992 = vmatpush1.msra.mxu0 0.0
      %993 = vmatprep.subr.mxu0 0.0
      %994 = vmatpush1.msra.mxu0 0.0
      %995 = vmatprep.subr.mxu0 0.0
      %996 = vmatpush1.msra.mxu0 0.0
      %997 = vmatprep.mubr.f32.mxu0 0.0
      %998 = vmatmul.mubr.f32.gmra.mrb[0].mxu0 %v928
      %v999 = vpop.f32.mrb[0].mxu0
      %v1000 = vadd.f32 %v924, %v999
      %v1001 = vpop.f32.mrb[0].mxu0
      %1002 = vmatprep.mubr.f32.mxu0 0.0
      %1003 = vmatmul.mubr.f32.gmra.mrb[0].mxu0 %v931
      %v1004 = vpop.f32.mrb[0].mxu0
      %v1005 = vadd.f32 %v924, %v1004
      %v1006 = vpop.f32.mrb[0].mxu0
      %1007 = vdwg.mxu0
      %vm1008 = vcmask 7168
      %1009 = vst.msk [vmem:[%s363] sm:$0xff] %vm1008, %v1000
      %1010 = vst.msk [vmem:[%s363 + $0x8] sm:$0xff] %vm1008, %v1005
      %s1011 = smul.u32 2, %s23
      %p1012 = scmp.lt.s32.totalorder %s1011, 3
      %s1013 = scalar_select %p1012, %s1011, 3
      %s1014 = smul.addr %s1013, 8
      %s1015 = scalar_lea.vmem %s10, %s1014
      // Predicated region
      $region61: #{tpu_custom_call.1} parent=59 // pred_check
        %p1016 = pneg %p256
      $region62: #{tpu_custom_call.1} parent=59 // pred_check_branch
        %1018 = sbr.rel (%p1016) target = $region64
      $region63: #{tpu_custom_call.1} parent=59 // pred_region
        %s1019 = smul.u32 2, %s23
      $region64: #{tpu_custom_call.1} parent=59 // pred_fallthru
        _
    $region60: #{tpu_custom_call.1} parent=5 // pred_fallthru
      _
    %p1020 = scmp.le.s32.totalorder 2, %s18
    // Predicated region
    $region65: #{tpu_custom_call.1} parent=5 // pred_check
      %p1021 = pneg %p1020
    $region66: #{tpu_custom_call.1} parent=5 // pred_check_branch
      %1023 = sbr.rel (%p1021) target = $region68
    $region67: #{tpu_custom_call.1} parent=5 // pred_region
      %s1024 = ssub.s32 %s18, 2
      // Predicated region
      $region69: #{tpu_custom_call.1} parent=67 // pred_check
        %p1025 = pneg %p262
      $region70: #{tpu_custom_call.1} parent=67 // pred_check_branch
        %1027 = sbr.rel (%p1025) target = $region72
      $region71: #{tpu_custom_call.1} parent=67 // pred_region
        %s1028 = smul.u32 2, %s24
        %p1029 = scmp.lt.s32.totalorder %s1028, 3
        %s1030 = scalar_select %p1029, %s1028, 3
        %s1031 = smul.addr %s1030, 8
        %s1032 = scalar_lea.vmem %s10, %s1031
      $region72: #{tpu_custom_call.1} parent=67 // pred_fallthru
        _
    $region68: #{tpu_custom_call.1} parent=5 // pred_fallthru
      _
  $region6: #{tpu_custom_call.1} parent=0 // loop_footer
    %s22 = sadd.s32 1, %s18
  $region7: #{tpu_custom_call.1} parent=0 // loop_footer_branch
    %17 = sbr.rel target = $region3
  $region8: #{tpu_custom_call.1} parent=0 // loop_exit
    _

</llo_original>
